<compile_context>
chip_gen: v5e
topology: v5e:2x2
jax: 0.10.0
libtpu: 0.0.40
codegen_flags: <defaults>
</compile_context>

<pallas_src>
import jax
import jax.numpy as jnp
from jax.experimental import pallas as pl
from jax.experimental.pallas import tpu as pltpu

# ----------------------------- configuration --------------------------------
B = 2            # batch
C = 4            # input channels
H = W = 16       # spatial
PATCH = 4        # patch size
N = (H // PATCH) * (W // PATCH)   # 16 tokens
P = C * PATCH * PATCH             # 64 flattened-patch dim
D = 32           # embed dim
NH = 2           # attention heads
HD = D // NH     # head dim = 16
MLP_H = 64       # MLP hidden
NUM_CLASSES = 8
EPS = 1e-5
BN = B * N       # 32
LANES = 128
OUT_ROWS = 8     # lane/sublane-dense output slab (8, 128)
SCALE = 1.0 / (HD ** 0.5)

# -------- packed-weight row offsets (bf16 slab, all boundaries multiples of 16) -----
WEMB_OFF = 0                       # (P, D)      patch embedding
WQKV_OFF = WEMB_OFF + P            # (D, 3D=96)  fused Q|K|V, Q pre-scaled by 1/sqrt(HD)
WO_OFF = WQKV_OFF + D              # (D, D)      attention output projection
W1_OFF = WO_OFF + D                # (D, MLP_H)
W2_OFF = W1_OFF + D                # (MLP_H, D)
WH_OFF = W2_OFF + MLP_H            # (D, 128)    classifier, lane-padded
W_ROWS = WH_OFF + D                # 256

# -------- packed-vector rows (f32 slab, one vector per row, lane-0 aligned) ---------
(V_BEMB, V_LN1G, V_LN1B, V_LN2G, V_LN2B, V_LNHG, V_LNHB,
 V_BQKV, V_BO, V_B1, V_B2, V_BHEAD) = range(12)
V_ROWS = 12

# advisory cost estimate for the XLA scheduler
_FLOPS = (2 * BN * P * D + 2 * BN * D * 3 * D + 2 * 2 * (B * NH) * N * N * HD
          + 2 * BN * D * D + 2 * BN * D * MLP_H + 2 * BN * MLP_H * D
          + 2 * OUT_ROWS * D * LANES)
_TRANS = B * NH * N * N + BN * MLP_H + 3 * BN
_BYTES = BN * P * 2 + W_ROWS * LANES * 2 + V_ROWS * LANES * 4 + OUT_ROWS * LANES * 4


def _gelu_tanh(x):
    # tanh approximation (EUP-friendly)
    return 0.5 * x * (1.0 + jnp.tanh(0.7978845608028654 * (x + 0.044715 * x * x * x)))


# ------------------------------- fused kernel --------------------------------
def mfvit_fused_kernel(xp_ref, w_ref, v_ref, o_ref):
    f32, bf16 = jnp.float32, jnp.bfloat16

    def vrow(r, width):
        return v_ref[r:r + 1, :width]            # (1, width) f32, lane-0 aligned

    def wseg(off, rows, cols):
        return w_ref[off:off + rows, :cols]      # (rows, cols) bf16, lane-0 aligned

    def ln(h, g, b):
        mu = jnp.mean(h, axis=-1, keepdims=True)
        var = jnp.mean((h - mu) ** 2, axis=-1, keepdims=True)
        return (h - mu) * jax.lax.rsqrt(var + EPS) * g + b

    # ---- patch embedding: (BN, P) @ (P, D) + b  (xp already bf16) ----
    xp = xp_ref[...]                                                     # (BN, P) bf16
    tok = jnp.dot(xp, wseg(WEMB_OFF, P, D),
                  preferred_element_type=f32) + vrow(V_BEMB, D)          # (BN, D) f32

    # ---- multi-head self-attention (pre-LN), fused QKV + head-batched einsums ----
    h = ln(tok, vrow(V_LN1G, D), vrow(V_LN1B, D))
    hb = h.astype(bf16)
    # one lane-dense projection: (BN, D) @ (D, 96); bias row is [bq*scale | 0 | bv]
    qkv = jnp.dot(hb, wseg(WQKV_OFF, D, 3 * D),
                  preferred_element_type=f32) + vrow(V_BQKV, 3 * D)      # (BN, 96) f32
    qkv_b = qkv.astype(bf16)                                             # single cast

    def head_slab(off):
        # gather both heads onto a leading group axis g = h*B + b (no transposes)
        return jnp.concatenate(
            [qkv_b[:, off + hi * HD: off + (hi + 1) * HD].reshape(B, N, HD)
             for hi in range(NH)], axis=0)                               # (B*NH, N, HD)

    q3 = head_slab(0)
    k3 = head_slab(D)
    v3 = head_slab(2 * D)

    # scores: one batched einsum over merged heads; scale already folded into Wq
    s = jnp.einsum('gqd,gkd->gqk', q3, k3,
                   preferred_element_type=f32)                           # (B*NH, N, N)
    s = s - jnp.max(s, axis=-1, keepdims=True)
    e = jnp.exp(s)
    p = e * pl.reciprocal(jnp.sum(e, axis=-1, keepdims=True), approx=True)
    o3 = jnp.einsum('gqk,gkd->gqd', p.astype(bf16), v3,
                    preferred_element_type=f32)                          # (B*NH, N, HD)

    # reassemble heads on the lane axis ([h0 | h1], matching reference concat order)
    a = jnp.concatenate([o3[hi * B:(hi + 1) * B] for hi in range(NH)],
                        axis=-1).reshape(BN, D)                          # (BN, D) f32
    tok = tok + jnp.dot(a.astype(bf16), wseg(WO_OFF, D, D),
                        preferred_element_type=f32) + vrow(V_BO, D)

    # ---- MLP (pre-LN) ----
    h = ln(tok, vrow(V_LN2G, D), vrow(V_LN2B, D))
    h1 = jnp.dot(h.astype(bf16), wseg(W1_OFF, D, MLP_H),
                 preferred_element_type=f32) + vrow(V_B1, MLP_H)
    h1 = _gelu_tanh(h1)
    tok = tok + jnp.dot(h1.astype(bf16), wseg(W2_OFF, MLP_H, D),
                        preferred_element_type=f32) + vrow(V_B2, D)

    # ---- head: LN -> mean pool over tokens -> linear (full (8,128) output slab) ----
    h = ln(tok, vrow(V_LNHG, D), vrow(V_LNHB, D))
    pooled = jnp.mean(h.reshape(B, N, D), axis=1)                        # (B, D)
    pooled8 = jnp.concatenate(
        [pooled, jnp.zeros((OUT_ROWS - B, D), f32)], axis=0)             # (8, D)
    logits = jnp.dot(pooled8.astype(bf16), wseg(WH_OFF, D, LANES),
                     preferred_element_type=f32) + vrow(V_BHEAD, LANES)  # (8, 128)
    o_ref[...] = logits.astype(o_ref.dtype)                              # unmasked store


# ------------------------------- wrappers -------------------------------------
def patchify(x):
    """NCHW (B, C, H, W) -> (B, N, P) with (C, ph, pw) channel-major flattening."""
    x = x.reshape(B, C, H // PATCH, PATCH, W // PATCH, PATCH)
    x = x.transpose(0, 2, 4, 1, 3, 5)                   # B, nh, nw, C, ph, pw
    return x.reshape(B, N, P)


def pack_params(params):
    """One-time layout prep (call ONCE, outside the per-call path):
    two lane-padded slabs (bf16 weights, f32 vectors)."""
    def pad_lanes(a):
        return jnp.pad(a, ((0, 0), (0, LANES - a.shape[1])))

    wqkv = params["wqkv"]
    # fold 1/sqrt(HD) into the Q columns
    wqkv_fused = jnp.concatenate([wqkv[:, :D] * SCALE, wqkv[:, D:]], axis=1)  # (D, 96)
    w_head_p = jnp.pad(params["w_head"], ((0, 0), (0, LANES - NUM_CLASSES)))  # (D, 128)

    segs = [params["w_embed"], wqkv_fused, params["wo"],
            params["w1"], params["w2"], w_head_p]
    wpack = jnp.concatenate([pad_lanes(s) for s in segs], axis=0).astype(jnp.bfloat16)
    assert wpack.shape == (W_ROWS, LANES)

    def row(v):
        v = jnp.asarray(v).reshape(-1)
        return jnp.pad(v, (0, LANES - v.shape[0]))[None, :]

    bqkv = params["bqkv"].reshape(-1)
    # bias row for the fused QKV matmul: [bq*scale | 0 (bk dropped: softmax-invariant) | bv]
    bqkv_fused = jnp.concatenate(
        [bqkv[:D] * SCALE, jnp.zeros((D,), jnp.float32), bqkv[2 * D:]])
    rows = [params["b_embed"], params["ln1_g"], params["ln1_b"],
            params["ln2_g"], params["ln2_b"], params["lnh_g"], params["lnh_b"],
            bqkv_fused, params["bo"], params["b1"], params["b2"], params["b_head"]]
    vpack = jnp.concatenate([row(r) for r in rows], axis=0).astype(jnp.float32)
    assert vpack.shape == (V_ROWS, LANES)
    return wpack, vpack


@jax.jit
def mfvit_forward(x, wpack, vpack):
    xp = patchify(x).reshape(BN, P).astype(jnp.bfloat16)   # (32, 64) bf16
    logits_padded = pl.pallas_call(
        mfvit_fused_kernel,
        out_shape=jax.ShapeDtypeStruct((OUT_ROWS, LANES), jnp.float32),
        in_specs=[pl.BlockSpec(memory_space=pltpu.MemorySpace.VMEM)] * 3,
        out_specs=pl.BlockSpec(memory_space=pltpu.MemorySpace.VMEM),
        cost_estimate=pl.CostEstimate(flops=_FLOPS, transcendentals=_TRANS,
                                      bytes_accessed=_BYTES),
    )(xp, wpack, vpack)
    return logits_padded[:B, :NUM_CLASSES]


# ------------------------- pure-JAX reference (check) -------------------------
def mfvit_reference(x, params):
    xp = patchify(x)
    tok = xp @ params["w_embed"] + params["b_embed"]           # (B, N, D)

    def ln(h, g, b):
        mu = jnp.mean(h, axis=-1, keepdims=True)
        var = jnp.mean((h - mu) ** 2, axis=-1, keepdims=True)
        return (h - mu) * jax.lax.rsqrt(var + EPS) * g + b

    h = ln(tok, params["ln1_g"], params["ln1_b"])
    qkv = h @ params["wqkv"] + params["bqkv"]
    q, k, v = qkv[..., :D], qkv[..., D:2 * D], qkv[..., 2 * D:]
    q = q.reshape(B, N, NH, HD).transpose(0, 2, 1, 3)
    k = k.reshape(B, N, NH, HD).transpose(0, 2, 1, 3)
    v = v.reshape(B, N, NH, HD).transpose(0, 2, 1, 3)
    s = jnp.einsum("bhqd,bhkd->bhqk", q, k) / (HD ** 0.5)
    p = jax.nn.softmax(s, axis=-1)
    a = jnp.einsum("bhqk,bhkd->bhqd", p, v).transpose(0, 2, 1, 3).reshape(B, N, D)
    tok = tok + a @ params["wo"] + params["bo"]

    h = ln(tok, params["ln2_g"], params["ln2_b"])
    h1 = h @ params["w1"] + params["b1"]
    h1 = _gelu_tanh(h1)
    tok = tok + h1 @ params["w2"] + params["b2"]

    h = ln(tok, params["lnh_g"], params["lnh_b"])
    pooled = jnp.mean(h, axis=1)
    return pooled @ params["w_head"] + params["b_head"]


# ------------------------------ parameter init --------------------------------
def init_params(key):
    ks = jax.random.split(key, 8)
    s = 0.02
    return {
        "w_embed": jax.random.normal(ks[0], (P, D), jnp.float32) * s,
        "b_embed": jnp.zeros((1, D), jnp.float32),
        "ln1_g": jnp.ones((1, D), jnp.float32),
        "ln1_b": jnp.zeros((1, D), jnp.float32),
        "wqkv": jax.random.normal(ks[1], (D, 3 * D), jnp.float32) * s,
        "bqkv": jnp.zeros((1, 3 * D), jnp.float32),
        "wo": jax.random.normal(ks[2], (D, D), jnp.float32) * s,
        "bo": jnp.zeros((1, D), jnp.float32),
        "ln2_g": jnp.ones((1, D), jnp.float32),
        "ln2_b": jnp.zeros((1, D), jnp.float32),
        "w1": jax.random.normal(ks[3], (D, MLP_H), jnp.float32) * s,
        "b1": jnp.zeros((1, MLP_H), jnp.float32),
        "w2": jax.random.normal(ks[4], (MLP_H, D), jnp.float32) * s,
        "b2": jnp.zeros((1, D), jnp.float32),
        "lnh_g": jnp.ones((1, D), jnp.float32),
        "lnh_b": jnp.zeros((1, D), jnp.float32),
        "w_head": jax.random.normal(ks[5], (D, NUM_CLASSES), jnp.float32) * s,
        "b_head": jnp.zeros((1, NUM_CLASSES), jnp.float32),
    }


# ---------------------------------- main --------------------------------------
if __name__ == "__main__":
    # TODO(synk): use_WaveSF / SSL / facial branches and training-time extra outputs
    # are not implemented (inference path only); _frozen is a training-time no-op.
    key = jax.random.PRNGKey(0)
    k_x, k_p = jax.random.split(key)
    x = jax.random.normal(k_x, (B, C, H, W), jnp.float32)   # NCHW, like PyTorch
    params = init_params(k_p)

    # one-time packing (hoisted out of the per-call path)
    wpack, vpack = pack_params(params)
    wpack = jax.block_until_ready(wpack)
    vpack = jax.block_until_ready(vpack)

    out = jax.block_until_ready(mfvit_forward(x, wpack, vpack))
    ref = jax.block_until_ready(mfvit_reference(x, params))

    assert out.shape == (B, NUM_CLASSES), out.shape
    assert jnp.allclose(out, ref, atol=1e-2, rtol=1e-2), (out, ref)
    print("KERNEL_OK")
</pallas_src>

<mosaic_0001>
module attributes {stable_mosaic.version = 11 : i64} {
  func.func @mfvit_fused_kernel(%arg0: memref<32x64xbf16, #tpu.memory_space<vmem>>, %arg1: memref<256x128xbf16, #tpu.memory_space<vmem>>, %arg2: memref<12x128xf32, #tpu.memory_space<vmem>>, %arg3: memref<8x128xf32, #tpu.memory_space<vmem>>) attributes {dimension_semantics = [], scalar_prefetch = 0 : i64, scratch_operands = 0 : i64, tpu.core_type = #tpu.core_type<tc>} {
    %c0 = arith.constant 0 : index
    %c0_0 = arith.constant 0 : index
    %0 = vector.load %arg0[%c0, %c0_0] : memref<32x64xbf16, #tpu.memory_space<vmem>>, vector<32x64xbf16>
    %c0_1 = arith.constant 0 : index
    %c0_2 = arith.constant 0 : index
    %1 = vector.load %arg1[%c0_1, %c0_2] : memref<256x128xbf16, #tpu.memory_space<vmem>>, vector<64x32xbf16>
    %cst = arith.constant dense<0.000000e+00> : vector<32x32xf32>
    %2 = tpu.matmul %0, %1, %cst {dimension_numbers = #tpu.dot_dimension_numbers<[1], [0], [0], [1], [0, 0, 1, 1], [], []>} : vector<32x64xbf16>, vector<64x32xbf16>, vector<32x32xf32> -> vector<32x32xf32>
    %c0_3 = arith.constant 0 : index
    %c0_4 = arith.constant 0 : index
    %3 = vector.load %arg2[%c0_3, %c0_4] : memref<12x128xf32, #tpu.memory_space<vmem>>, vector<1x32xf32>
    %4 = vector.broadcast %3 : vector<1x32xf32> to vector<32x32xf32>
    %5 = arith.addf %2, %4 : vector<32x32xf32>
    %c1 = arith.constant 1 : index
    %c0_5 = arith.constant 0 : index
    %6 = vector.load %arg2[%c1, %c0_5] : memref<12x128xf32, #tpu.memory_space<vmem>>, vector<1x32xf32>
    %c2 = arith.constant 2 : index
    %c0_6 = arith.constant 0 : index
    %7 = vector.load %arg2[%c2, %c0_6] : memref<12x128xf32, #tpu.memory_space<vmem>>, vector<1x32xf32>
    %cst_7 = arith.constant dense<0.000000e+00> : vector<32xf32>
    %8 = vector.multi_reduction <add>, %5, %cst_7 [1] : vector<32x32xf32> to vector<32xf32>
    %9 = vector.shape_cast %8 : vector<32xf32> to vector<32x1xf32>
    %cst_8 = arith.constant 3.200000e+01 : f32
    %10 = vector.broadcast %cst_8 : f32 to vector<32x1xf32>
    %11 = arith.divf %9, %10 : vector<32x1xf32>
    %12 = vector.broadcast %11 : vector<32x1xf32> to vector<32x32xf32>
    %13 = arith.subf %5, %12 : vector<32x32xf32>
    %14 = arith.mulf %13, %13 : vector<32x32xf32>
    %cst_9 = arith.constant dense<0.000000e+00> : vector<32xf32>
    %15 = vector.multi_reduction <add>, %14, %cst_9 [1] : vector<32x32xf32> to vector<32xf32>
    %16 = vector.shape_cast %15 : vector<32xf32> to vector<32x1xf32>
    %cst_10 = arith.constant 3.200000e+01 : f32
    %17 = vector.broadcast %cst_10 : f32 to vector<32x1xf32>
    %18 = arith.divf %16, %17 : vector<32x1xf32>
    %19 = vector.broadcast %11 : vector<32x1xf32> to vector<32x32xf32>
    %20 = arith.subf %5, %19 : vector<32x32xf32>
    %cst_11 = arith.constant 9.99999974E-6 : f32
    %21 = vector.broadcast %cst_11 : f32 to vector<32x1xf32>
    %22 = arith.addf %18, %21 : vector<32x1xf32>
    %23 = math.rsqrt %22 : vector<32x1xf32>
    %24 = vector.broadcast %23 : vector<32x1xf32> to vector<32x32xf32>
    %25 = arith.mulf %20, %24 : vector<32x32xf32>
    %26 = vector.broadcast %6 : vector<1x32xf32> to vector<32x32xf32>
    %27 = arith.mulf %25, %26 : vector<32x32xf32>
    %28 = vector.broadcast %7 : vector<1x32xf32> to vector<32x32xf32>
    %29 = arith.addf %27, %28 : vector<32x32xf32>
    %30 = arith.truncf %29 : vector<32x32xf32> to vector<32x32xbf16>
    %c64 = arith.constant 64 : index
    %c0_12 = arith.constant 0 : index
    %31 = vector.load %arg1[%c64, %c0_12] : memref<256x128xbf16, #tpu.memory_space<vmem>>, vector<32x96xbf16>
    %cst_13 = arith.constant dense<0.000000e+00> : vector<32x96xf32>
    %32 = tpu.matmul %30, %31, %cst_13 {dimension_numbers = #tpu.dot_dimension_numbers<[1], [0], [0], [1], [0, 0, 1, 1], [], []>} : vector<32x32xbf16>, vector<32x96xbf16>, vector<32x96xf32> -> vector<32x96xf32>
    %c7 = arith.constant 7 : index
    %c0_14 = arith.constant 0 : index
    %33 = vector.load %arg2[%c7, %c0_14] : memref<12x128xf32, #tpu.memory_space<vmem>>, vector<1x96xf32>
    %34 = vector.broadcast %33 : vector<1x96xf32> to vector<32x96xf32>
    %35 = arith.addf %32, %34 : vector<32x96xf32>
    %36 = arith.truncf %35 : vector<32x96xf32> to vector<32x96xbf16>
    %37 = vector.extract_strided_slice %36 {offsets = [0, 0], sizes = [32, 16], strides = [1, 1]} : vector<32x96xbf16> to vector<32x16xbf16>
    %38 = vector.shape_cast %37 : vector<32x16xbf16> to vector<2x16x16xbf16>
    %39 = vector.extract_strided_slice %36 {offsets = [0, 16], sizes = [32, 16], strides = [1, 1]} : vector<32x96xbf16> to vector<32x16xbf16>
    %40 = vector.shape_cast %39 : vector<32x16xbf16> to vector<2x16x16xbf16>
    %41 = tpu.concatenate %38, %40 in 0 : vector<2x16x16xbf16>, vector<2x16x16xbf16> -> vector<4x16x16xbf16>
    %42 = vector.extract_strided_slice %36 {offsets = [0, 32], sizes = [32, 16], strides = [1, 1]} : vector<32x96xbf16> to vector<32x16xbf16>
    %43 = vector.shape_cast %42 : vector<32x16xbf16> to vector<2x16x16xbf16>
    %44 = vector.extract_strided_slice %36 {offsets = [0, 48], sizes = [32, 16], strides = [1, 1]} : vector<32x96xbf16> to vector<32x16xbf16>
    %45 = vector.shape_cast %44 : vector<32x16xbf16> to vector<2x16x16xbf16>
    %46 = tpu.concatenate %43, %45 in 0 : vector<2x16x16xbf16>, vector<2x16x16xbf16> -> vector<4x16x16xbf16>
    %47 = vector.extract_strided_slice %36 {offsets = [0, 64], sizes = [32, 16], strides = [1, 1]} : vector<32x96xbf16> to vector<32x16xbf16>
    %48 = vector.shape_cast %47 : vector<32x16xbf16> to vector<2x16x16xbf16>
    %49 = vector.extract_strided_slice %36 {offsets = [0, 80], sizes = [32, 16], strides = [1, 1]} : vector<32x96xbf16> to vector<32x16xbf16>
    %50 = vector.shape_cast %49 : vector<32x16xbf16> to vector<2x16x16xbf16>
    %51 = tpu.concatenate %48, %50 in 0 : vector<2x16x16xbf16>, vector<2x16x16xbf16> -> vector<4x16x16xbf16>
    "tpu.trace_start"() <{level = 10 : i32, message = "gqd,gkd->gqk"}> : () -> ()
    %cst_15 = arith.constant dense<0.000000e+00> : vector<4x16x16xf32>
    %52 = tpu.matmul %41, %46, %cst_15 {dimension_numbers = #tpu.dot_dimension_numbers<[2], [2], [1], [1], [0, 0, 0, 1, 1, 1], [0], [0]>} : vector<4x16x16xbf16>, vector<4x16x16xbf16>, vector<4x16x16xf32> -> vector<4x16x16xf32>
    "tpu.trace_stop"() : () -> ()
    %cst_16 = arith.constant dense<0xFF800000> : vector<4x16xf32>
    %53 = vector.multi_reduction <maximumf>, %52, %cst_16 [2] : vector<4x16x16xf32> to vector<4x16xf32>
    %54 = vector.shape_cast %53 : vector<4x16xf32> to vector<4x16x1xf32>
    %55 = vector.broadcast %54 : vector<4x16x1xf32> to vector<4x16x16xf32>
    %56 = arith.subf %52, %55 : vector<4x16x16xf32>
    %57 = math.exp %56 : vector<4x16x16xf32>
    %cst_17 = arith.constant dense<0.000000e+00> : vector<4x16xf32>
    %58 = vector.multi_reduction <add>, %57, %cst_17 [2] : vector<4x16x16xf32> to vector<4x16xf32>
    %59 = vector.shape_cast %58 : vector<4x16xf32> to vector<4x16x1xf32>
    %60 = tpu.reciprocal %59 {approx = true} : vector<4x16x1xf32> -> vector<4x16x1xf32>
    %61 = vector.broadcast %60 : vector<4x16x1xf32> to vector<4x16x16xf32>
    %62 = arith.mulf %57, %61 : vector<4x16x16xf32>
    %63 = arith.truncf %62 : vector<4x16x16xf32> to vector<4x16x16xbf16>
    "tpu.trace_start"() <{level = 10 : i32, message = "gqk,gkd->gqd"}> : () -> ()
    %cst_18 = arith.constant dense<0.000000e+00> : vector<4x16x16xf32>
    %64 = tpu.matmul %63, %51, %cst_18 {dimension_numbers = #tpu.dot_dimension_numbers<[2], [1], [1], [2], [0, 0, 0, 1, 1, 2], [0], [0]>} : vector<4x16x16xbf16>, vector<4x16x16xbf16>, vector<4x16x16xf32> -> vector<4x16x16xf32>
    "tpu.trace_stop"() : () -> ()
    %65 = vector.extract_strided_slice %64 {offsets = [0, 0, 0], sizes = [2, 16, 16], strides = [1, 1, 1]} : vector<4x16x16xf32> to vector<2x16x16xf32>
    %66 = vector.extract_strided_slice %64 {offsets = [2, 0, 0], sizes = [2, 16, 16], strides = [1, 1, 1]} : vector<4x16x16xf32> to vector<2x16x16xf32>
    %67 = tpu.concatenate %65, %66 in 2 : vector<2x16x16xf32>, vector<2x16x16xf32> -> vector<2x16x32xf32>
    %68 = vector.shape_cast %67 : vector<2x16x32xf32> to vector<32x32xf32>
    %69 = arith.truncf %68 : vector<32x32xf32> to vector<32x32xbf16>
    %c96 = arith.constant 96 : index
    %c0_19 = arith.constant 0 : index
    %70 = vector.load %arg1[%c96, %c0_19] : memref<256x128xbf16, #tpu.memory_space<vmem>>, vector<32x32xbf16>
    %cst_20 = arith.constant dense<0.000000e+00> : vector<32x32xf32>
    %71 = tpu.matmul %69, %70, %cst_20 {dimension_numbers = #tpu.dot_dimension_numbers<[1], [0], [0], [1], [0, 0, 1, 1], [], []>} : vector<32x32xbf16>, vector<32x32xbf16>, vector<32x32xf32> -> vector<32x32xf32>
    %72 = arith.addf %5, %71 : vector<32x32xf32>
    %c8 = arith.constant 8 : index
    %c0_21 = arith.constant 0 : index
    %73 = vector.load %arg2[%c8, %c0_21] : memref<12x128xf32, #tpu.memory_space<vmem>>, vector<1x32xf32>
    %74 = vector.broadcast %73 : vector<1x32xf32> to vector<32x32xf32>
    %75 = arith.addf %72, %74 : vector<32x32xf32>
    %c3 = arith.constant 3 : index
    %c0_22 = arith.constant 0 : index
    %76 = vector.load %arg2[%c3, %c0_22] : memref<12x128xf32, #tpu.memory_space<vmem>>, vector<1x32xf32>
    %c4 = arith.constant 4 : index
    %c0_23 = arith.constant 0 : index
    %77 = vector.load %arg2[%c4, %c0_23] : memref<12x128xf32, #tpu.memory_space<vmem>>, vector<1x32xf32>
    %cst_24 = arith.constant dense<0.000000e+00> : vector<32xf32>
    %78 = vector.multi_reduction <add>, %75, %cst_24 [1] : vector<32x32xf32> to vector<32xf32>
    %79 = vector.shape_cast %78 : vector<32xf32> to vector<32x1xf32>
    %cst_25 = arith.constant 3.200000e+01 : f32
    %80 = vector.broadcast %cst_25 : f32 to vector<32x1xf32>
    %81 = arith.divf %79, %80 : vector<32x1xf32>
    %82 = vector.broadcast %81 : vector<32x1xf32> to vector<32x32xf32>
    %83 = arith.subf %75, %82 : vector<32x32xf32>
    %84 = arith.mulf %83, %83 : vector<32x32xf32>
    %cst_26 = arith.constant dense<0.000000e+00> : vector<32xf32>
    %85 = vector.multi_reduction <add>, %84, %cst_26 [1] : vector<32x32xf32> to vector<32xf32>
    %86 = vector.shape_cast %85 : vector<32xf32> to vector<32x1xf32>
    %cst_27 = arith.constant 3.200000e+01 : f32
    %87 = vector.broadcast %cst_27 : f32 to vector<32x1xf32>
    %88 = arith.divf %86, %87 : vector<32x1xf32>
    %89 = vector.broadcast %81 : vector<32x1xf32> to vector<32x32xf32>
    %90 = arith.subf %75, %89 : vector<32x32xf32>
    %cst_28 = arith.constant 9.99999974E-6 : f32
    %91 = vector.broadcast %cst_28 : f32 to vector<32x1xf32>
    %92 = arith.addf %88, %91 : vector<32x1xf32>
    %93 = math.rsqrt %92 : vector<32x1xf32>
    %94 = vector.broadcast %93 : vector<32x1xf32> to vector<32x32xf32>
    %95 = arith.mulf %90, %94 : vector<32x32xf32>
    %96 = vector.broadcast %76 : vector<1x32xf32> to vector<32x32xf32>
    %97 = arith.mulf %95, %96 : vector<32x32xf32>
    %98 = vector.broadcast %77 : vector<1x32xf32> to vector<32x32xf32>
    %99 = arith.addf %97, %98 : vector<32x32xf32>
    %100 = arith.truncf %99 : vector<32x32xf32> to vector<32x32xbf16>
    %c128 = arith.constant 128 : index
    %c0_29 = arith.constant 0 : index
    %101 = vector.load %arg1[%c128, %c0_29] : memref<256x128xbf16, #tpu.memory_space<vmem>>, vector<32x64xbf16>
    %cst_30 = arith.constant dense<0.000000e+00> : vector<32x64xf32>
    %102 = tpu.matmul %100, %101, %cst_30 {dimension_numbers = #tpu.dot_dimension_numbers<[1], [0], [0], [1], [0, 0, 1, 1], [], []>} : vector<32x32xbf16>, vector<32x64xbf16>, vector<32x64xf32> -> vector<32x64xf32>
    %c9 = arith.constant 9 : index
    %c0_31 = arith.constant 0 : index
    %103 = vector.load %arg2[%c9, %c0_31] : memref<12x128xf32, #tpu.memory_space<vmem>>, vector<1x64xf32>
    %104 = vector.broadcast %103 : vector<1x64xf32> to vector<32x64xf32>
    %105 = arith.addf %102, %104 : vector<32x64xf32>
    %cst_32 = arith.constant 5.000000e-01 : f32
    %106 = vector.broadcast %cst_32 : f32 to vector<32x64xf32>
    %107 = arith.mulf %106, %105 : vector<32x64xf32>
    %cst_33 = arith.constant 4.471500e-02 : f32
    %108 = vector.broadcast %cst_33 : f32 to vector<32x64xf32>
    %109 = arith.mulf %108, %105 : vector<32x64xf32>
    %110 = arith.mulf %109, %105 : vector<32x64xf32>
    %111 = arith.mulf %110, %105 : vector<32x64xf32>
    %112 = arith.addf %105, %111 : vector<32x64xf32>
    %cst_34 = arith.constant 0.797884583 : f32
    %113 = vector.broadcast %cst_34 : f32 to vector<32x64xf32>
    %114 = arith.mulf %113, %112 : vector<32x64xf32>
    %115 = math.tanh %114 : vector<32x64xf32>
    %cst_35 = arith.constant 1.000000e+00 : f32
    %116 = vector.broadcast %cst_35 : f32 to vector<32x64xf32>
    %117 = arith.addf %116, %115 : vector<32x64xf32>
    %118 = arith.mulf %107, %117 : vector<32x64xf32>
    %119 = arith.truncf %118 : vector<32x64xf32> to vector<32x64xbf16>
    %c160 = arith.constant 160 : index
    %c0_36 = arith.constant 0 : index
    %120 = vector.load %arg1[%c160, %c0_36] : memref<256x128xbf16, #tpu.memory_space<vmem>>, vector<64x32xbf16>
    %cst_37 = arith.constant dense<0.000000e+00> : vector<32x32xf32>
    %121 = tpu.matmul %119, %120, %cst_37 {dimension_numbers = #tpu.dot_dimension_numbers<[1], [0], [0], [1], [0, 0, 1, 1], [], []>} : vector<32x64xbf16>, vector<64x32xbf16>, vector<32x32xf32> -> vector<32x32xf32>
    %122 = arith.addf %75, %121 : vector<32x32xf32>
    %c10 = arith.constant 10 : index
    %c0_38 = arith.constant 0 : index
    %123 = vector.load %arg2[%c10, %c0_38] : memref<12x128xf32, #tpu.memory_space<vmem>>, vector<1x32xf32>
    %124 = vector.broadcast %123 : vector<1x32xf32> to vector<32x32xf32>
    %125 = arith.addf %122, %124 : vector<32x32xf32>
    %c5 = arith.constant 5 : index
    %c0_39 = arith.constant 0 : index
    %126 = vector.load %arg2[%c5, %c0_39] : memref<12x128xf32, #tpu.memory_space<vmem>>, vector<1x32xf32>
    %c6 = arith.constant 6 : index
    %c0_40 = arith.constant 0 : index
    %127 = vector.load %arg2[%c6, %c0_40] : memref<12x128xf32, #tpu.memory_space<vmem>>, vector<1x32xf32>
    %cst_41 = arith.constant dense<0.000000e+00> : vector<32xf32>
    %128 = vector.multi_reduction <add>, %125, %cst_41 [1] : vector<32x32xf32> to vector<32xf32>
    %129 = vector.shape_cast %128 : vector<32xf32> to vector<32x1xf32>
    %cst_42 = arith.constant 3.200000e+01 : f32
    %130 = vector.broadcast %cst_42 : f32 to vector<32x1xf32>
    %131 = arith.divf %129, %130 : vector<32x1xf32>
    %132 = vector.broadcast %131 : vector<32x1xf32> to vector<32x32xf32>
    %133 = arith.subf %125, %132 : vector<32x32xf32>
    %134 = arith.mulf %133, %133 : vector<32x32xf32>
    %cst_43 = arith.constant dense<0.000000e+00> : vector<32xf32>
    %135 = vector.multi_reduction <add>, %134, %cst_43 [1] : vector<32x32xf32> to vector<32xf32>
    %136 = vector.shape_cast %135 : vector<32xf32> to vector<32x1xf32>
    %cst_44 = arith.constant 3.200000e+01 : f32
    %137 = vector.broadcast %cst_44 : f32 to vector<32x1xf32>
    %138 = arith.divf %136, %137 : vector<32x1xf32>
    %139 = vector.broadcast %131 : vector<32x1xf32> to vector<32x32xf32>
    %140 = arith.subf %125, %139 : vector<32x32xf32>
    %cst_45 = arith.constant 9.99999974E-6 : f32
    %141 = vector.broadcast %cst_45 : f32 to vector<32x1xf32>
    %142 = arith.addf %138, %141 : vector<32x1xf32>
    %143 = math.rsqrt %142 : vector<32x1xf32>
    %144 = vector.broadcast %143 : vector<32x1xf32> to vector<32x32xf32>
    %145 = arith.mulf %140, %144 : vector<32x32xf32>
    %146 = vector.broadcast %126 : vector<1x32xf32> to vector<32x32xf32>
    %147 = arith.mulf %145, %146 : vector<32x32xf32>
    %148 = vector.broadcast %127 : vector<1x32xf32> to vector<32x32xf32>
    %149 = arith.addf %147, %148 : vector<32x32xf32>
    %150 = vector.shape_cast %149 : vector<32x32xf32> to vector<2x16x32xf32>
    %cst_46 = arith.constant dense<0.000000e+00> : vector<2x32xf32>
    %151 = vector.multi_reduction <add>, %150, %cst_46 [1] : vector<2x16x32xf32> to vector<2x32xf32>
    %cst_47 = arith.constant 1.600000e+01 : f32
    %152 = vector.broadcast %cst_47 : f32 to vector<2x32xf32>
    %153 = arith.divf %151, %152 : vector<2x32xf32>
    %cst_48 = arith.constant 0.000000e+00 : f32
    %154 = vector.broadcast %cst_48 : f32 to vector<6x32xf32>
    %155 = tpu.concatenate %153, %154 in 0 : vector<2x32xf32>, vector<6x32xf32> -> vector<8x32xf32>
    %156 = arith.truncf %155 : vector<8x32xf32> to vector<8x32xbf16>
    %c224 = arith.constant 224 : index
    %c0_49 = arith.constant 0 : index
    %157 = vector.load %arg1[%c224, %c0_49] : memref<256x128xbf16, #tpu.memory_space<vmem>>, vector<32x128xbf16>
    %cst_50 = arith.constant dense<0.000000e+00> : vector<8x128xf32>
    %158 = tpu.matmul %156, %157, %cst_50 {dimension_numbers = #tpu.dot_dimension_numbers<[1], [0], [0], [1], [0, 0, 1, 1], [], []>} : vector<8x32xbf16>, vector<32x128xbf16>, vector<8x128xf32> -> vector<8x128xf32>
    %c11 = arith.constant 11 : index
    %c0_51 = arith.constant 0 : index
    %159 = vector.load %arg2[%c11, %c0_51] : memref<12x128xf32, #tpu.memory_space<vmem>>, vector<1x128xf32>
    %160 = vector.broadcast %159 : vector<1x128xf32> to vector<8x128xf32>
    %161 = arith.addf %158, %160 : vector<8x128xf32>
    %c0_52 = arith.constant 0 : index
    %c0_53 = arith.constant 0 : index
    %162 = vector.load %arg3[%c0_52, %c0_53] : memref<8x128xf32, #tpu.memory_space<vmem>>, vector<8x128xf32>
    tpu.vector_store %arg3[%c0_52, %c0_53], %161 {strides = array<i32>} : memref<8x128xf32, #tpu.memory_space<vmem>>, vector<8x128xf32>,
    return
  }
}

</mosaic_0001>

<llo_original>
// kernel: mfvit_forward.1
$region0: #{mfvit_forward.1}
  #allocation0 [shape = 'u32[]', space=smem, size = 0x4, offset = 0x4, fixed_abs, tag = 'smem constant byte address 0x4 - core index']
  #allocation1 [shape = 'u32[72,128]{1,0:T(1,128)}', space=vmem, size = 0x9000, scoped, tag = 'internal scratch']
  %s0 = inlined_call_operand.vmem [shape: bf16[32,64], index: 0, kind: input, shape index: {}]
  %s1 = inlined_call_operand.vmem [shape: bf16[256,128], index: 1, kind: input, shape index: {}]
  %s2 = inlined_call_operand.vmem [shape: f32[12,128], index: 2, kind: input, shape index: {}]
  %s3 = inlined_call_operand.vmem [shape: f32[8,128], index: 3, kind: output, shape index: {}]
  %s4 = sld [smem:[#allocation0]]
  $region22: #{mfvit_forward.1} parent=0
    _
  %s6 = ssub.s32 1, %s4
  %s7 = scalar_select 0, %s6, %s4
  // Predicated region
  $region2: #{mfvit_forward.1} parent=0 // pred_check
    _
  $region3: #{mfvit_forward.1} parent=0 // pred_check_branch
    %9 = sbr.rel (0) target = $region5
  $region4: #{mfvit_forward.1} parent=0 // pred_region
    _
  $region5: #{mfvit_forward.1} parent=0 // pred_fallthru
    _
  // Predicated region
  $region6: #{mfvit_forward.1} parent=0 // pred_check
    _
  $region7: #{mfvit_forward.1} parent=0 // pred_check_branch
    %11 = sbr.rel (0) target = $region9
  $region8: #{mfvit_forward.1} parent=0 // pred_region
    _
  $region9: #{mfvit_forward.1} parent=0 // pred_fallthru
    _
  // Predicated region
  $region10: #{mfvit_forward.1} parent=0 // pred_check
    _
  $region11: #{mfvit_forward.1} parent=0 // pred_check_branch
    %13 = sbr.rel (0) target = $region13
  $region12: #{mfvit_forward.1} parent=0 // pred_region
    _
  $region13: #{mfvit_forward.1} parent=0 // pred_fallthru
    _
  %v15 = vld [vmem:[%s0] sm:$0xf]
  %v16 = vld [vmem:[%s0 + $0x4] sm:$0xf]
  %v17 = vld [vmem:[%s0 + $0x8] sm:$0xf]
  %v18 = vld [vmem:[%s0 + $0xc] sm:$0xf]
  %v19 = vld [vmem:[%s1] sm:$0xf]
  %v20 = vld [vmem:[%s1 + $0x4] sm:$0xf]
  %v21 = vld [vmem:[%s1 + $0x8] sm:$0xf]
  %v22 = vld [vmem:[%s1 + $0xc] sm:$0xf]
  %v23 = vld [vmem:[%s1 + $0x10] sm:$0xf]
  %v24 = vld [vmem:[%s1 + $0x14] sm:$0xf]
  %v25 = vld [vmem:[%s1 + $0x18] sm:$0xf]
  %v26 = vld [vmem:[%s1 + $0x1c] sm:$0xf]
  %v27 = vld [vmem:[%s2] sm:$0x1]
  %v28 = vperm.slane %v27, 0
  %v33 = vunpack.c.l.b16 %v15
  %v34 = vunpack.c.l.b16 %v16
  %v35 = vunpack.c.l.b16 %v17
  %v36 = vunpack.c.l.b16 %v18
  %v37 = vpack.c.b16 %v34, %v33
  %v38 = vpack.c.b16 %v36, %v35
  %v47 = vunpack.c.l.b16 %v19
  %v48 = vunpack.c.l.b16 %v20
  %v49 = vunpack.c.l.b16 %v21
  %v50 = vunpack.c.l.b16 %v22
  %v51 = vunpack.c.l.b16 %v23
  %v52 = vunpack.c.l.b16 %v24
  %v53 = vunpack.c.l.b16 %v25
  %v54 = vunpack.c.l.b16 %v26
  %v55 = vpack.c.b16 %v48, %v47
  %v56 = vpack.c.b16 %v50, %v49
  %v57 = vpack.c.b16 %v52, %v51
  %v58 = vpack.c.b16 %v54, %v53
  %vm63 = vcmask 523264
  %v65 = vsel %vm63, %v37, 0
  %v68 = vsel %vm63, %v38, 0
  %70 = vmatpush.bf16.msra.mxu0 0
  %71 = vmatpush.bf16.msra.mxu0 0
  %72 = vmatpush.bf16.msra.mxu0 0
  %73 = vmatpush.bf16.msra.mxu0 0
  %74 = vmatpush.bf16.msra.mxu0 %v58
  %75 = vmatpush.bf16.msra.mxu0 %v57
  %76 = vmatpush.bf16.msra.mxu0 %v56
  %77 = vmatpush.bf16.msra.mxu0 %v55
  %78 = vmatmul.bf16.gmra.mxu0 %v65
  %v79 = vpop.f32.mrf.mxu0
  %v80 = vadd.f32 %v28, %v79
  %v81 = vpop.f32.mrf.mxu0
  %v82 = vadd.f32 %v28, %v81
  %83 = vmatmul.bf16.gmra.mxu0 %v68
  %v84 = vpop.f32.mrf.mxu0
  %v85 = vadd.f32 %v28, %v84
  %v86 = vpop.f32.mrf.mxu0
  %v87 = vadd.f32 %v28, %v86
  %88 = vdwg.mxu0
  %v89 = vld [vmem:[%s2 + $0x1] sm:$0x1]
  %v90 = vld [vmem:[%s2 + $0x2] sm:$0x1]
  %vm91 = vcmask 261120
  %v92 = vsel %vm91, %v80, 0.0
  %93 = vadd.xlane.f32.xlu0 %v92
  %v94 = vpop.xlane.xlu0 %93
  %v95 = vsel %vm91, %v82, 0.0
  %96 = vadd.xlane.f32.xlu0 %v95
  %v97 = vpop.xlane.xlu0 %96
  %v98 = vsel %vm91, %v85, 0.0
  %99 = vadd.xlane.f32.xlu0 %v98
  %v100 = vpop.xlane.xlu0 %99
  %v101 = vsel %vm91, %v87, 0.0
  %102 = vadd.xlane.f32.xlu0 %v101
  %v103 = vpop.xlane.xlu0 %102
  %v104 = vrcp.pop 32.0
  %v105 = vmul.f32 32.0, %v104
  %v106 = vsub.f32 1.0, %v105
  %v107 = vmul.f32 %v104, %v106
  %v108 = vadd.f32 %v104, %v107
  %vm109 = vweird.f32 %v104
  %v110 = vsel %vm109, %v104, %v108
  %v111 = vmul.f32 %v94, %v110
  %v112 = vmul.f32 %v97, %v110
  %v113 = vmul.f32 %v100, %v110
  %v114 = vmul.f32 %v103, %v110
  %v115 = vsub.f32 %v80, %v111
  %v116 = vsub.f32 %v82, %v112
  %v117 = vsub.f32 %v85, %v113
  %v118 = vsub.f32 %v87, %v114
  %v119 = vmul.f32 %v115, %v115
  %v120 = vmul.f32 %v116, %v116
  %v121 = vmul.f32 %v117, %v117
  %v122 = vmul.f32 %v118, %v118
  %v123 = vsel %vm91, %v119, 0.0
  %124 = vadd.xlane.f32.xlu0 %v123
  %v125 = vpop.xlane.xlu0 %124
  %v126 = vsel %vm91, %v120, 0.0
  %127 = vadd.xlane.f32.xlu0 %v126
  %v128 = vpop.xlane.xlu0 %127
  %v129 = vsel %vm91, %v121, 0.0
  %130 = vadd.xlane.f32.xlu0 %v129
  %v131 = vpop.xlane.xlu0 %130
  %v132 = vsel %vm91, %v122, 0.0
  %133 = vadd.xlane.f32.xlu0 %v132
  %v134 = vpop.xlane.xlu0 %133
  %v135 = vmul.f32 %v125, %v110
  %v136 = vmul.f32 %v128, %v110
  %v137 = vmul.f32 %v131, %v110
  %v138 = vmul.f32 %v134, %v110
  %v139 = vadd.f32 %v135, 1e-05
  %v140 = vadd.f32 %v136, 1e-05
  %v141 = vadd.f32 %v137, 1e-05
  %v142 = vadd.f32 %v138, 1e-05
  %v143 = vrsqrt.pop %v139
  %v144 = vmul.f32 %v143, %v139
  %v145 = vmul.f32 %v144, %v143
  %v146 = vmul.f32 0.5, %v145
  %v147 = vsub.f32 1.5, %v146
  %v148 = vmul.f32 %v143, %v147
  %vm149 = vweird.f32 %v139
  %vm150 = vweird.f32 %v143
  %vm151 = vmor %vm149, %vm150
  %v152 = vsel %vm151, %v143, %v148
  %v153 = vrsqrt.pop %v140
  %v154 = vmul.f32 %v153, %v140
  %v155 = vmul.f32 %v154, %v153
  %v156 = vmul.f32 0.5, %v155
  %v157 = vsub.f32 1.5, %v156
  %v158 = vmul.f32 %v153, %v157
  %vm159 = vweird.f32 %v140
  %vm160 = vweird.f32 %v153
  %vm161 = vmor %vm159, %vm160
  %v162 = vsel %vm161, %v153, %v158
  %v163 = vrsqrt.pop %v141
  %v164 = vmul.f32 %v163, %v141
  %v165 = vmul.f32 %v164, %v163
  %v166 = vmul.f32 0.5, %v165
  %v167 = vsub.f32 1.5, %v166
  %v168 = vmul.f32 %v163, %v167
  %vm169 = vweird.f32 %v141
  %vm170 = vweird.f32 %v163
  %vm171 = vmor %vm169, %vm170
  %v172 = vsel %vm171, %v163, %v168
  %v173 = vrsqrt.pop %v142
  %v174 = vmul.f32 %v173, %v142
  %v175 = vmul.f32 %v174, %v173
  %v176 = vmul.f32 0.5, %v175
  %v177 = vsub.f32 1.5, %v176
  %v178 = vmul.f32 %v173, %v177
  %vm179 = vweird.f32 %v142
  %vm180 = vweird.f32 %v173
  %vm181 = vmor %vm179, %vm180
  %v182 = vsel %vm181, %v173, %v178
  %v183 = vmul.f32 %v115, %v152
  %v184 = vmul.f32 %v116, %v162
  %v185 = vmul.f32 %v117, %v172
  %v186 = vmul.f32 %v118, %v182
  %v187 = vperm.slane %v89, 0
  %v188 = vmul.f32 %v183, %v187
  %v189 = vmul.f32 %v184, %v187
  %v190 = vmul.f32 %v185, %v187
  %v191 = vmul.f32 %v186, %v187
  %v192 = vperm.slane %v90, 0
  %v193 = vadd.f32 %v188, %v192
  %v194 = vadd.f32 %v189, %v192
  %v195 = vadd.f32 %v190, %v192
  %v196 = vadd.f32 %v191, %v192
  %v197 = vpack.c.bf16 %v194, %v193
  %v198 = vpack.c.bf16 %v196, %v195
  %v199 = vld [vmem:[%s1 + $0x20] sm:$0xf]
  %v200 = vld [vmem:[%s1 + $0x24] sm:$0xf]
  %v201 = vld [vmem:[%s1 + $0x28] sm:$0xf]
  %v202 = vld [vmem:[%s1 + $0x2c] sm:$0xf]
  %v203 = vld [vmem:[%s2 + $0x7] sm:$0x1]
  %v204 = vperm.slane %v203, 0
  %v209 = vunpack.c.l.b16 %v199
  %v210 = vunpack.c.l.b16 %v200
  %v211 = vunpack.c.l.b16 %v201
  %v212 = vunpack.c.l.b16 %v202
  %v213 = vpack.c.b16 %v210, %v209
  %v214 = vpack.c.b16 %v212, %v211
  %v218 = vsel %vm91, %v197, 0
  %v221 = vsel %vm91, %v198, 0
  %223 = vmatpush.bf16.msra.mxu0 0
  %224 = vmatpush.bf16.msra.mxu0 0
  %225 = vmatpush.bf16.msra.mxu0 0
  %226 = vmatpush.bf16.msra.mxu0 0
  %227 = vmatpush.bf16.msra.mxu0 0
  %228 = vmatpush.bf16.msra.mxu0 0
  %229 = vmatpush.bf16.msra.mxu0 %v214
  %230 = vmatpush.bf16.msra.mxu0 %v213
  %231 = vmatmul.bf16.gmra.mxu0 %v218
  %v232 = vpop.f32.mrf.mxu0
  %v233 = vadd.f32 %v204, %v232
  %v234 = vpop.f32.mrf.mxu0
  %v235 = vadd.f32 %v204, %v234
  %236 = vmatmul.bf16.gmra.mxu0 %v221
  %v237 = vpop.f32.mrf.mxu0
  %v238 = vadd.f32 %v204, %v237
  %v239 = vpop.f32.mrf.mxu0
  %v240 = vadd.f32 %v204, %v239
  %241 = vdwg.mxu0
  %v242 = vpack.c.bf16 %v233, %v233
  %v243 = vpack.c.bf16 %v235, %v235
  %v244 = vpack.c.bf16 %v238, %v238
  %v245 = vpack.c.bf16 %v240, %v240
  %250 = vrot.lane.b32.xlu0 %v242, 112
  %v251 = vpop.permute.xlu0 %250
  %252 = vrot.lane.b32.xlu0 %v243, 112
  %v253 = vpop.permute.xlu0 %252
  %254 = vrot.lane.b32.xlu0 %v244, 112
  %v255 = vpop.permute.xlu0 %254
  %256 = vrot.lane.b32.xlu0 %v245, 112
  %v257 = vpop.permute.xlu0 %256
  %v258 = vunpack.c.l.b16 %v242
  %v259 = vunpack.c.l.b16 %v243
  %v260 = vpack.c.b16 %v259, %v258
  %261 = vrot.lane.b32.xlu0 %v260, 96
  %v262 = vpop.permute.xlu0 %261
  %vm263 = vcmask 130048
  %v265 = vsel %vm263, %v260, 0
  %v268 = vsel %vm263, %v262, 0
  %270 = vmatpush.bf16.xpose.msra.mxu0 0
  %271 = vmatpush.bf16.xpose.msra.mxu0 0
  %272 = vmatpush.bf16.xpose.msra.mxu0 0
  %273 = vmatpush.bf16.xpose.msra.mxu0 0
  %274 = vmatpush.bf16.xpose.msra.mxu0 0
  %275 = vmatpush.bf16.xpose.msra.mxu0 0
  %276 = vmatpush.bf16.xpose.msra.mxu0 0
  %277 = vmatpush.bf16.xpose.msra.mxu0 %v268
  %278 = vmatmul.bf16.gmra.mxu0 %v265
  %v279 = vpop.f32.mrf.mxu0
  %v280 = vadd.f32 0.0, %v279
  %v281 = vpop.f32.mrf.mxu0
  %v282 = vadd.f32 0.0, %v281
  %283 = vdwg.mxu0
  %v284 = vunpack.c.l.b16 %v244
  %v285 = vunpack.c.l.b16 %v245
  %v286 = vpack.c.b16 %v285, %v284
  %287 = vrot.lane.b32.xlu0 %v286, 96
  %v288 = vpop.permute.xlu0 %287
  %v290 = vsel %vm263, %v286, 0
  %v293 = vsel %vm263, %v288, 0
  %295 = vmatpush.bf16.xpose.msra.mxu0 0
  %296 = vmatpush.bf16.xpose.msra.mxu0 0
  %297 = vmatpush.bf16.xpose.msra.mxu0 0
  %298 = vmatpush.bf16.xpose.msra.mxu0 0
  %299 = vmatpush.bf16.xpose.msra.mxu0 0
  %300 = vmatpush.bf16.xpose.msra.mxu0 0
  %301 = vmatpush.bf16.xpose.msra.mxu0 0
  %302 = vmatpush.bf16.xpose.msra.mxu0 %v293
  %303 = vmatmul.bf16.gmra.mxu0 %v290
  %v304 = vpop.f32.mrf.mxu0
  %v305 = vadd.f32 0.0, %v304
  %v306 = vpop.f32.mrf.mxu0
  %v307 = vadd.f32 0.0, %v306
  %308 = vdwg.mxu0
  %v309 = vunpack.c.l.b16 %v251
  %v310 = vunpack.c.l.b16 %v253
  %v311 = vpack.c.b16 %v310, %v309
  %312 = vrot.lane.b32.xlu0 %v311, 96
  %v313 = vpop.permute.xlu0 %312
  %v315 = vsel %vm263, %v311, 0
  %v318 = vsel %vm263, %v313, 0
  %320 = vmatpush.bf16.xpose.msra.mxu0 0
  %321 = vmatpush.bf16.xpose.msra.mxu0 0
  %322 = vmatpush.bf16.xpose.msra.mxu0 0
  %323 = vmatpush.bf16.xpose.msra.mxu0 0
  %324 = vmatpush.bf16.xpose.msra.mxu0 0
  %325 = vmatpush.bf16.xpose.msra.mxu0 0
  %326 = vmatpush.bf16.xpose.msra.mxu0 0
  %327 = vmatpush.bf16.xpose.msra.mxu0 %v318
  %328 = vmatmul.bf16.gmra.mxu0 %v315
  %v329 = vpop.f32.mrf.mxu0
  %v330 = vadd.f32 0.0, %v329
  %v331 = vpop.f32.mrf.mxu0
  %v332 = vadd.f32 0.0, %v331
  %333 = vdwg.mxu0
  %v334 = vunpack.c.l.b16 %v255
  %v335 = vunpack.c.l.b16 %v257
  %v336 = vpack.c.b16 %v335, %v334
  %337 = vrot.lane.b32.xlu0 %v336, 96
  %v338 = vpop.permute.xlu0 %337
  %v340 = vsel %vm263, %v336, 0
  %v343 = vsel %vm263, %v338, 0
  %345 = vmatpush.bf16.xpose.msra.mxu0 0
  %346 = vmatpush.bf16.xpose.msra.mxu0 0
  %347 = vmatpush.bf16.xpose.msra.mxu0 0
  %348 = vmatpush.bf16.xpose.msra.mxu0 0
  %349 = vmatpush.bf16.xpose.msra.mxu0 0
  %350 = vmatpush.bf16.xpose.msra.mxu0 0
  %351 = vmatpush.bf16.xpose.msra.mxu0 0
  %352 = vmatpush.bf16.xpose.msra.mxu0 %v343
  %353 = vmatmul.bf16.gmra.mxu0 %v340
  %v354 = vpop.f32.mrf.mxu0
  %v355 = vadd.f32 0.0, %v354
  %v356 = vpop.f32.mrf.mxu0
  %v357 = vadd.f32 0.0, %v356
  %358 = vdwg.mxu0
  %v359 = vsel %vm263, %v280, -inf
  %360 = vmax.xlane.f32.xlu0 %v359
  %v361 = vpop.xlane.xlu0 %360
  %v362 = vsel %vm263, %v282, -inf
  %363 = vmax.xlane.f32.xlu0 %v362
  %v364 = vpop.xlane.xlu0 %363
  %v365 = vsel %vm263, %v305, -inf
  %366 = vmax.xlane.f32.xlu0 %v365
  %v367 = vpop.xlane.xlu0 %366
  %v368 = vsel %vm263, %v307, -inf
  %369 = vmax.xlane.f32.xlu0 %v368
  %v370 = vpop.xlane.xlu0 %369
  %v371 = vsel %vm263, %v330, -inf
  %372 = vmax.xlane.f32.xlu0 %v371
  %v373 = vpop.xlane.xlu0 %372
  %v374 = vsel %vm263, %v332, -inf
  %375 = vmax.xlane.f32.xlu0 %v374
  %v376 = vpop.xlane.xlu0 %375
  %v377 = vsel %vm263, %v355, -inf
  %378 = vmax.xlane.f32.xlu0 %v377
  %v379 = vpop.xlane.xlu0 %378
  %v380 = vsel %vm263, %v357, -inf
  %381 = vmax.xlane.f32.xlu0 %v380
  %v382 = vpop.xlane.xlu0 %381
  %v383 = vsub.f32 %v280, %v361
  %v384 = vsub.f32 %v282, %v364
  %v385 = vsub.f32 %v305, %v367
  %v386 = vsub.f32 %v307, %v370
  %v387 = vsub.f32 %v330, %v373
  %v388 = vsub.f32 %v332, %v376
  %v389 = vsub.f32 %v355, %v379
  %v390 = vsub.f32 %v357, %v382
  %v391 = vmul.f32 %v383, 1.442695
  %v392 = vpow.pop %v391
  %v393 = vmul.f32 %v384, 1.442695
  %v394 = vpow.pop %v393
  %v395 = vmul.f32 %v385, 1.442695
  %v396 = vpow.pop %v395
  %v397 = vmul.f32 %v386, 1.442695
  %v398 = vpow.pop %v397
  %v399 = vmul.f32 %v387, 1.442695
  %v400 = vpow.pop %v399
  %v401 = vmul.f32 %v388, 1.442695
  %v402 = vpow.pop %v401
  %v403 = vmul.f32 %v389, 1.442695
  %v404 = vpow.pop %v403
  %v405 = vmul.f32 %v390, 1.442695
  %v406 = vpow.pop %v405
  %v407 = vsel %vm263, %v392, 0.0
  %408 = vadd.xlane.f32.xlu0 %v407
  %v409 = vpop.xlane.xlu0 %408
  %v410 = vsel %vm263, %v394, 0.0
  %411 = vadd.xlane.f32.xlu0 %v410
  %v412 = vpop.xlane.xlu0 %411
  %v413 = vsel %vm263, %v396, 0.0
  %414 = vadd.xlane.f32.xlu0 %v413
  %v415 = vpop.xlane.xlu0 %414
  %v416 = vsel %vm263, %v398, 0.0
  %417 = vadd.xlane.f32.xlu0 %v416
  %v418 = vpop.xlane.xlu0 %417
  %v419 = vsel %vm263, %v400, 0.0
  %420 = vadd.xlane.f32.xlu0 %v419
  %v421 = vpop.xlane.xlu0 %420
  %v422 = vsel %vm263, %v402, 0.0
  %423 = vadd.xlane.f32.xlu0 %v422
  %v424 = vpop.xlane.xlu0 %423
  %v425 = vsel %vm263, %v404, 0.0
  %426 = vadd.xlane.f32.xlu0 %v425
  %v427 = vpop.xlane.xlu0 %426
  %v428 = vsel %vm263, %v406, 0.0
  %429 = vadd.xlane.f32.xlu0 %v428
  %v430 = vpop.xlane.xlu0 %429
  %v431 = vrcp.pop %v409
  %v432 = vrcp.pop %v412
  %v433 = vrcp.pop %v415
  %v434 = vrcp.pop %v418
  %v435 = vrcp.pop %v421
  %v436 = vrcp.pop %v424
  %v437 = vrcp.pop %v427
  %v438 = vrcp.pop %v430
  %v439 = vmul.f32 %v392, %v431
  %v440 = vmul.f32 %v394, %v432
  %v441 = vmul.f32 %v396, %v433
  %v442 = vmul.f32 %v398, %v434
  %v443 = vmul.f32 %v400, %v435
  %v444 = vmul.f32 %v402, %v436
  %v445 = vmul.f32 %v404, %v437
  %v446 = vmul.f32 %v406, %v438
  %v447 = vpack.c.bf16 %v439, %v439
  %v448 = vpack.c.bf16 %v440, %v440
  %v449 = vpack.c.bf16 %v441, %v441
  %v450 = vpack.c.bf16 %v442, %v442
  %v451 = vpack.c.bf16 %v443, %v443
  %v452 = vpack.c.bf16 %v444, %v444
  %v453 = vpack.c.bf16 %v445, %v445
  %v454 = vpack.c.bf16 %v446, %v446
  %v457 = vunpack.c.l.b16 %v447
  %v458 = vunpack.c.l.b16 %v448
  %v459 = vpack.c.b16 %v458, %v457
  %460 = vrot.lane.b32.xlu0 %v260, 64
  %v461 = vpop.permute.xlu0 %460
  %v464 = vsel %vm263, %v459, 0
  %466 = vmatpush.bf16.msra.mxu0 0
  %467 = vmatpush.bf16.msra.mxu0 0
  %468 = vmatpush.bf16.msra.mxu0 0
  %469 = vmatpush.bf16.msra.mxu0 0
  %470 = vmatpush.bf16.msra.mxu0 0
  %471 = vmatpush.bf16.msra.mxu0 0
  %472 = vmatpush.bf16.msra.mxu0 0
  %473 = vmatpush.bf16.msra.mxu0 %v461
  %474 = vmatmul.bf16.gmra.mxu0 %v464
  %v475 = vpop.f32.mrf.mxu0
  %v476 = vadd.f32 0.0, %v475
  %v477 = vpop.f32.mrf.mxu0
  %v478 = vadd.f32 0.0, %v477
  %479 = vdwg.mxu0
  %v482 = vunpack.c.l.b16 %v449
  %v483 = vunpack.c.l.b16 %v450
  %v484 = vpack.c.b16 %v483, %v482
  %485 = vrot.lane.b32.xlu0 %v286, 64
  %v486 = vpop.permute.xlu0 %485
  %v489 = vsel %vm263, %v484, 0
  %491 = vmatpush.bf16.msra.mxu0 0
  %492 = vmatpush.bf16.msra.mxu0 0
  %493 = vmatpush.bf16.msra.mxu0 0
  %494 = vmatpush.bf16.msra.mxu0 0
  %495 = vmatpush.bf16.msra.mxu0 0
  %496 = vmatpush.bf16.msra.mxu0 0
  %497 = vmatpush.bf16.msra.mxu0 0
  %498 = vmatpush.bf16.msra.mxu0 %v486
  %499 = vmatmul.bf16.gmra.mxu0 %v489
  %v500 = vpop.f32.mrf.mxu0
  %v501 = vadd.f32 0.0, %v500
  %v502 = vpop.f32.mrf.mxu0
  %v503 = vadd.f32 0.0, %v502
  %504 = vdwg.mxu0
  %v507 = vunpack.c.l.b16 %v451
  %v508 = vunpack.c.l.b16 %v452
  %v509 = vpack.c.b16 %v508, %v507
  %510 = vrot.lane.b32.xlu0 %v311, 64
  %v511 = vpop.permute.xlu0 %510
  %v514 = vsel %vm263, %v509, 0
  %516 = vmatpush.bf16.msra.mxu0 0
  %517 = vmatpush.bf16.msra.mxu0 0
  %518 = vmatpush.bf16.msra.mxu0 0
  %519 = vmatpush.bf16.msra.mxu0 0
  %520 = vmatpush.bf16.msra.mxu0 0
  %521 = vmatpush.bf16.msra.mxu0 0
  %522 = vmatpush.bf16.msra.mxu0 0
  %523 = vmatpush.bf16.msra.mxu0 %v511
  %524 = vmatmul.bf16.gmra.mxu0 %v514
  %v525 = vpop.f32.mrf.mxu0
  %v526 = vadd.f32 0.0, %v525
  %v527 = vpop.f32.mrf.mxu0
  %v528 = vadd.f32 0.0, %v527
  %529 = vdwg.mxu0
  %v532 = vunpack.c.l.b16 %v453
  %v533 = vunpack.c.l.b16 %v454
  %v534 = vpack.c.b16 %v533, %v532
  %535 = vrot.lane.b32.xlu0 %v336, 64
  %v536 = vpop.permute.xlu0 %535
  %v539 = vsel %vm263, %v534, 0
  %541 = vmatpush.bf16.msra.mxu0 0
  %542 = vmatpush.bf16.msra.mxu0 0
  %543 = vmatpush.bf16.msra.mxu0 0
  %544 = vmatpush.bf16.msra.mxu0 0
  %545 = vmatpush.bf16.msra.mxu0 0
  %546 = vmatpush.bf16.msra.mxu0 0
  %547 = vmatpush.bf16.msra.mxu0 0
  %548 = vmatpush.bf16.msra.mxu0 %v536
  %549 = vmatmul.bf16.gmra.mxu0 %v539
  %v550 = vpop.f32.mrf.mxu0
  %v551 = vadd.f32 0.0, %v550
  %v552 = vpop.f32.mrf.mxu0
  %v553 = vadd.f32 0.0, %v552
  %554 = vdwg.mxu0
  %559 = vrot.lane.b32.xlu0 %v526, 16
  %v560 = vpop.permute.xlu0 %559
  %561 = vrot.lane.b32.xlu0 %v528, 16
  %v562 = vpop.permute.xlu0 %561
  %563 = vrot.lane.b32.xlu0 %v551, 16
  %v564 = vpop.permute.xlu0 %563
  %565 = vrot.lane.b32.xlu0 %v553, 16
  %v566 = vpop.permute.xlu0 %565
  %v571 = vsel %vm263, %v476, %v560
  %v572 = vsel %vm263, %v478, %v562
  %v573 = vsel %vm263, %v501, %v564
  %v574 = vsel %vm263, %v503, %v566
  %v575 = vpack.c.bf16 %v572, %v571
  %v576 = vpack.c.bf16 %v574, %v573
  %v577 = vld [vmem:[%s1 + $0x30] sm:$0xf]
  %v578 = vld [vmem:[%s1 + $0x34] sm:$0xf]
  %v579 = vld [vmem:[%s1 + $0x38] sm:$0xf]
  %v580 = vld [vmem:[%s1 + $0x3c] sm:$0xf]
  %v585 = vunpack.c.l.b16 %v577
  %v586 = vunpack.c.l.b16 %v578
  %v587 = vunpack.c.l.b16 %v579
  %v588 = vunpack.c.l.b16 %v580
  %v589 = vpack.c.b16 %v586, %v585
  %v590 = vpack.c.b16 %v588, %v587
  %v594 = vsel %vm91, %v575, 0
  %v597 = vsel %vm91, %v576, 0
  %599 = vmatpush.bf16.msra.mxu0 0
  %600 = vmatpush.bf16.msra.mxu0 0
  %601 = vmatpush.bf16.msra.mxu0 0
  %602 = vmatpush.bf16.msra.mxu0 0
  %603 = vmatpush.bf16.msra.mxu0 0
  %604 = vmatpush.bf16.msra.mxu0 0
  %605 = vmatpush.bf16.msra.mxu0 %v590
  %606 = vmatpush.bf16.msra.mxu0 %v589
  %607 = vmatmul.bf16.gmra.mxu0 %v594
  %v608 = vpop.f32.mrf.mxu0
  %v609 = vadd.f32 0.0, %v608
  %v610 = vpop.f32.mrf.mxu0
  %v611 = vadd.f32 0.0, %v610
  %612 = vmatmul.bf16.gmra.mxu0 %v597
  %v613 = vpop.f32.mrf.mxu0
  %v614 = vadd.f32 0.0, %v613
  %v615 = vpop.f32.mrf.mxu0
  %v616 = vadd.f32 0.0, %v615
  %617 = vdwg.mxu0
  %v618 = vadd.f32 %v80, %v609
  %v619 = vadd.f32 %v82, %v611
  %v620 = vadd.f32 %v85, %v614
  %v621 = vadd.f32 %v87, %v616
  %v622 = vld [vmem:[%s2 + $0x8] sm:$0x1]
  %v623 = vperm.slane %v622, 0
  %v624 = vadd.f32 %v618, %v623
  %v625 = vadd.f32 %v619, %v623
  %v626 = vadd.f32 %v620, %v623
  %v627 = vadd.f32 %v621, %v623
  %v628 = vld [vmem:[%s2 + $0x3] sm:$0x1]
  %v629 = vld [vmem:[%s2 + $0x4] sm:$0x1]
  %v630 = vsel %vm91, %v624, 0.0
  %631 = vadd.xlane.f32.xlu0 %v630
  %v632 = vpop.xlane.xlu0 %631
  %v633 = vsel %vm91, %v625, 0.0
  %634 = vadd.xlane.f32.xlu0 %v633
  %v635 = vpop.xlane.xlu0 %634
  %v636 = vsel %vm91, %v626, 0.0
  %637 = vadd.xlane.f32.xlu0 %v636
  %v638 = vpop.xlane.xlu0 %637
  %v639 = vsel %vm91, %v627, 0.0
  %640 = vadd.xlane.f32.xlu0 %v639
  %v641 = vpop.xlane.xlu0 %640
  %v642 = vmul.f32 %v632, %v110
  %v643 = vmul.f32 %v635, %v110
  %v644 = vmul.f32 %v638, %v110
  %v645 = vmul.f32 %v641, %v110
  %v646 = vsub.f32 %v624, %v642
  %v647 = vsub.f32 %v625, %v643
  %v648 = vsub.f32 %v626, %v644
  %v649 = vsub.f32 %v627, %v645
  %v650 = vmul.f32 %v646, %v646
  %v651 = vmul.f32 %v647, %v647
  %v652 = vmul.f32 %v648, %v648
  %v653 = vmul.f32 %v649, %v649
  %v654 = vsel %vm91, %v650, 0.0
  %655 = vadd.xlane.f32.xlu0 %v654
  %v656 = vpop.xlane.xlu0 %655
  %v657 = vsel %vm91, %v651, 0.0
  %658 = vadd.xlane.f32.xlu0 %v657
  %v659 = vpop.xlane.xlu0 %658
  %v660 = vsel %vm91, %v652, 0.0
  %661 = vadd.xlane.f32.xlu0 %v660
  %v662 = vpop.xlane.xlu0 %661
  %v663 = vsel %vm91, %v653, 0.0
  %664 = vadd.xlane.f32.xlu0 %v663
  %v665 = vpop.xlane.xlu0 %664
  %v666 = vmul.f32 %v656, %v110
  %v667 = vmul.f32 %v659, %v110
  %v668 = vmul.f32 %v662, %v110
  %v669 = vmul.f32 %v665, %v110
  %v670 = vadd.f32 %v666, 1e-05
  %v671 = vadd.f32 %v667, 1e-05
  %v672 = vadd.f32 %v668, 1e-05
  %v673 = vadd.f32 %v669, 1e-05
  %v674 = vrsqrt.pop %v670
  %v675 = vmul.f32 %v674, %v670
  %v676 = vmul.f32 %v675, %v674
  %v677 = vmul.f32 0.5, %v676
  %v678 = vsub.f32 1.5, %v677
  %v679 = vmul.f32 %v674, %v678
  %vm680 = vweird.f32 %v670
  %vm681 = vweird.f32 %v674
  %vm682 = vmor %vm680, %vm681
  %v683 = vsel %vm682, %v674, %v679
  %v684 = vrsqrt.pop %v671
  %v685 = vmul.f32 %v684, %v671
  %v686 = vmul.f32 %v685, %v684
  %v687 = vmul.f32 0.5, %v686
  %v688 = vsub.f32 1.5, %v687
  %v689 = vmul.f32 %v684, %v688
  %vm690 = vweird.f32 %v671
  %vm691 = vweird.f32 %v684
  %vm692 = vmor %vm690, %vm691
  %v693 = vsel %vm692, %v684, %v689
  %v694 = vrsqrt.pop %v672
  %v695 = vmul.f32 %v694, %v672
  %v696 = vmul.f32 %v695, %v694
  %v697 = vmul.f32 0.5, %v696
  %v698 = vsub.f32 1.5, %v697
  %v699 = vmul.f32 %v694, %v698
  %vm700 = vweird.f32 %v672
  %vm701 = vweird.f32 %v694
  %vm702 = vmor %vm700, %vm701
  %v703 = vsel %vm702, %v694, %v699
  %v704 = vrsqrt.pop %v673
  %v705 = vmul.f32 %v704, %v673
  %v706 = vmul.f32 %v705, %v704
  %v707 = vmul.f32 0.5, %v706
  %v708 = vsub.f32 1.5, %v707
  %v709 = vmul.f32 %v704, %v708
  %vm710 = vweird.f32 %v673
  %vm711 = vweird.f32 %v704
  %vm712 = vmor %vm710, %vm711
  %v713 = vsel %vm712, %v704, %v709
  %v714 = vmul.f32 %v646, %v683
  %v715 = vmul.f32 %v647, %v693
  %v716 = vmul.f32 %v648, %v703
  %v717 = vmul.f32 %v649, %v713
  %v718 = vperm.slane %v628, 0
  %v719 = vmul.f32 %v714, %v718
  %v720 = vmul.f32 %v715, %v718
  %v721 = vmul.f32 %v716, %v718
  %v722 = vmul.f32 %v717, %v718
  %v723 = vperm.slane %v629, 0
  %v724 = vadd.f32 %v719, %v723
  %v725 = vadd.f32 %v720, %v723
  %v726 = vadd.f32 %v721, %v723
  %v727 = vadd.f32 %v722, %v723
  %v728 = vpack.c.bf16 %v725, %v724
  %v729 = vpack.c.bf16 %v727, %v726
  %v730 = vld [vmem:[%s1 + $0x40] sm:$0xf]
  %v731 = vld [vmem:[%s1 + $0x44] sm:$0xf]
  %v732 = vld [vmem:[%s1 + $0x48] sm:$0xf]
  %v733 = vld [vmem:[%s1 + $0x4c] sm:$0xf]
  %v734 = vld [vmem:[%s2 + $0x9] sm:$0x1]
  %v735 = vperm.slane %v734, 0
  %v740 = vunpack.c.l.b16 %v730
  %v741 = vunpack.c.l.b16 %v731
  %v742 = vunpack.c.l.b16 %v732
  %v743 = vunpack.c.l.b16 %v733
  %v744 = vpack.c.b16 %v741, %v740
  %v745 = vpack.c.b16 %v743, %v742
  %v749 = vsel %vm91, %v728, 0
  %v752 = vsel %vm91, %v729, 0
  %754 = vmatpush.bf16.msra.mxu0 0
  %755 = vmatpush.bf16.msra.mxu0 0
  %756 = vmatpush.bf16.msra.mxu0 0
  %757 = vmatpush.bf16.msra.mxu0 0
  %758 = vmatpush.bf16.msra.mxu0 0
  %759 = vmatpush.bf16.msra.mxu0 0
  %760 = vmatpush.bf16.msra.mxu0 %v745
  %761 = vmatpush.bf16.msra.mxu0 %v744
  %762 = vmatmul.bf16.gmra.mxu0 %v749
  %v763 = vpop.f32.mrf.mxu0
  %v764 = vadd.f32 %v735, %v763
  %v765 = vpop.f32.mrf.mxu0
  %v766 = vadd.f32 %v735, %v765
  %767 = vmatmul.bf16.gmra.mxu0 %v752
  %v768 = vpop.f32.mrf.mxu0
  %v769 = vadd.f32 %v735, %v768
  %v770 = vpop.f32.mrf.mxu0
  %v771 = vadd.f32 %v735, %v770
  %772 = vdwg.mxu0
  %v773 = vmul.f32 %v764, 0.5
  %v774 = vmul.f32 %v766, 0.5
  %v775 = vmul.f32 %v769, 0.5
  %v776 = vmul.f32 %v771, 0.5
  %v777 = vmul.f32 %v764, 0.044715
  %v778 = vmul.f32 %v766, 0.044715
  %v779 = vmul.f32 %v769, 0.044715
  %v780 = vmul.f32 %v771, 0.044715
  %v781 = vmul.f32 %v777, %v764
  %v782 = vmul.f32 %v778, %v766
  %v783 = vmul.f32 %v779, %v769
  %v784 = vmul.f32 %v780, %v771
  %v785 = vmul.f32 %v781, %v764
  %v786 = vmul.f32 %v782, %v766
  %v787 = vmul.f32 %v783, %v769
  %v788 = vmul.f32 %v784, %v771
  %v789 = vadd.f32 %v764, %v785
  %v790 = vadd.f32 %v766, %v786
  %v791 = vadd.f32 %v769, %v787
  %v792 = vadd.f32 %v771, %v788
  %v793 = vmul.f32 %v789, 0.7978846
  %v794 = vmul.f32 %v790, 0.7978846
  %v795 = vmul.f32 %v791, 0.7978846
  %v796 = vmul.f32 %v792, 0.7978846
  %v797 = vtanh.pop %v793
  %v798 = vtanh.pop %v794
  %v799 = vtanh.pop %v795
  %v800 = vtanh.pop %v796
  %v801 = vadd.f32 %v797, 1.0
  %v802 = vadd.f32 %v798, 1.0
  %v803 = vadd.f32 %v799, 1.0
  %v804 = vadd.f32 %v800, 1.0
  %v805 = vmul.f32 %v773, %v801
  %v806 = vmul.f32 %v774, %v802
  %v807 = vmul.f32 %v775, %v803
  %v808 = vmul.f32 %v776, %v804
  %v809 = vpack.c.bf16 %v806, %v805
  %v810 = vpack.c.bf16 %v808, %v807
  %v811 = vld [vmem:[%s1 + $0x50] sm:$0xf]
  %v812 = vld [vmem:[%s1 + $0x54] sm:$0xf]
  %v813 = vld [vmem:[%s1 + $0x58] sm:$0xf]
  %v814 = vld [vmem:[%s1 + $0x5c] sm:$0xf]
  %v815 = vld [vmem:[%s1 + $0x60] sm:$0xf]
  %v816 = vld [vmem:[%s1 + $0x64] sm:$0xf]
  %v817 = vld [vmem:[%s1 + $0x68] sm:$0xf]
  %v818 = vld [vmem:[%s1 + $0x6c] sm:$0xf]
  %v827 = vunpack.c.l.b16 %v811
  %v828 = vunpack.c.l.b16 %v812
  %v829 = vunpack.c.l.b16 %v813
  %v830 = vunpack.c.l.b16 %v814
  %v831 = vunpack.c.l.b16 %v815
  %v832 = vunpack.c.l.b16 %v816
  %v833 = vunpack.c.l.b16 %v817
  %v834 = vunpack.c.l.b16 %v818
  %v835 = vpack.c.b16 %v828, %v827
  %v836 = vpack.c.b16 %v830, %v829
  %v837 = vpack.c.b16 %v832, %v831
  %v838 = vpack.c.b16 %v834, %v833
  %v844 = vsel %vm63, %v809, 0
  %v847 = vsel %vm63, %v810, 0
  %849 = vmatpush.bf16.msra.mxu0 0
  %850 = vmatpush.bf16.msra.mxu0 0
  %851 = vmatpush.bf16.msra.mxu0 0
  %852 = vmatpush.bf16.msra.mxu0 0
  %853 = vmatpush.bf16.msra.mxu0 %v838
  %854 = vmatpush.bf16.msra.mxu0 %v837
  %855 = vmatpush.bf16.msra.mxu0 %v836
  %856 = vmatpush.bf16.msra.mxu0 %v835
  %857 = vmatmul.bf16.gmra.mxu0 %v844
  %v858 = vpop.f32.mrf.mxu0
  %v859 = vadd.f32 0.0, %v858
  %v860 = vpop.f32.mrf.mxu0
  %v861 = vadd.f32 0.0, %v860
  %862 = vmatmul.bf16.gmra.mxu0 %v847
  %v863 = vpop.f32.mrf.mxu0
  %v864 = vadd.f32 0.0, %v863
  %v865 = vpop.f32.mrf.mxu0
  %v866 = vadd.f32 0.0, %v865
  %867 = vdwg.mxu0
  %v868 = vadd.f32 %v624, %v859
  %v869 = vadd.f32 %v625, %v861
  %v870 = vadd.f32 %v626, %v864
  %v871 = vadd.f32 %v627, %v866
  %v872 = vld [vmem:[%s2 + $0xa] sm:$0x1]
  %v873 = vperm.slane %v872, 0
  %v874 = vadd.f32 %v868, %v873
  %v875 = vadd.f32 %v869, %v873
  %v876 = vadd.f32 %v870, %v873
  %v877 = vadd.f32 %v871, %v873
  %v878 = vld [vmem:[%s2 + $0x5] sm:$0x1]
  %v879 = vld [vmem:[%s2 + $0x6] sm:$0x1]
  %v880 = vsel %vm91, %v874, 0.0
  %881 = vadd.xlane.f32.xlu0 %v880
  %v882 = vpop.xlane.xlu0 %881
  %v883 = vsel %vm91, %v875, 0.0
  %884 = vadd.xlane.f32.xlu0 %v883
  %v885 = vpop.xlane.xlu0 %884
  %v886 = vsel %vm91, %v876, 0.0
  %887 = vadd.xlane.f32.xlu0 %v886
  %v888 = vpop.xlane.xlu0 %887
  %v889 = vsel %vm91, %v877, 0.0
  %890 = vadd.xlane.f32.xlu0 %v889
  %v891 = vpop.xlane.xlu0 %890
  %v892 = vmul.f32 %v882, %v110
  %v893 = vmul.f32 %v885, %v110
  %v894 = vmul.f32 %v888, %v110
  %v895 = vmul.f32 %v891, %v110
  %v896 = vsub.f32 %v874, %v892
  %v897 = vsub.f32 %v875, %v893
  %v898 = vsub.f32 %v876, %v894
  %v899 = vsub.f32 %v877, %v895
  %v900 = vmul.f32 %v896, %v896
  %v901 = vmul.f32 %v897, %v897
  %v902 = vmul.f32 %v898, %v898
  %v903 = vmul.f32 %v899, %v899
  %v904 = vsel %vm91, %v900, 0.0
  %905 = vadd.xlane.f32.xlu0 %v904
  %v906 = vpop.xlane.xlu0 %905
  %v907 = vsel %vm91, %v901, 0.0
  %908 = vadd.xlane.f32.xlu0 %v907
  %v909 = vpop.xlane.xlu0 %908
  %v910 = vsel %vm91, %v902, 0.0
  %911 = vadd.xlane.f32.xlu0 %v910
  %v912 = vpop.xlane.xlu0 %911
  %v913 = vsel %vm91, %v903, 0.0
  %914 = vadd.xlane.f32.xlu0 %v913
  %v915 = vpop.xlane.xlu0 %914
  %v916 = vmul.f32 %v906, %v110
  %v917 = vmul.f32 %v909, %v110
  %v918 = vmul.f32 %v912, %v110
  %v919 = vmul.f32 %v915, %v110
  %v920 = vadd.f32 %v916, 1e-05
  %v921 = vadd.f32 %v917, 1e-05
  %v922 = vadd.f32 %v918, 1e-05
  %v923 = vadd.f32 %v919, 1e-05
  %v924 = vrsqrt.pop %v920
  %v925 = vmul.f32 %v924, %v920
  %v926 = vmul.f32 %v925, %v924
  %v927 = vmul.f32 0.5, %v926
  %v928 = vsub.f32 1.5, %v927
  %v929 = vmul.f32 %v924, %v928
  %vm930 = vweird.f32 %v920
  %vm931 = vweird.f32 %v924
  %vm932 = vmor %vm930, %vm931
  %v933 = vsel %vm932, %v924, %v929
  %v934 = vrsqrt.pop %v921
  %v935 = vmul.f32 %v934, %v921
  %v936 = vmul.f32 %v935, %v934
  %v937 = vmul.f32 0.5, %v936
  %v938 = vsub.f32 1.5, %v937
  %v939 = vmul.f32 %v934, %v938
  %vm940 = vweird.f32 %v921
  %vm941 = vweird.f32 %v934
  %vm942 = vmor %vm940, %vm941
  %v943 = vsel %vm942, %v934, %v939
  %v944 = vrsqrt.pop %v922
  %v945 = vmul.f32 %v944, %v922
  %v946 = vmul.f32 %v945, %v944
  %v947 = vmul.f32 0.5, %v946
  %v948 = vsub.f32 1.5, %v947
  %v949 = vmul.f32 %v944, %v948
  %vm950 = vweird.f32 %v922
  %vm951 = vweird.f32 %v944
  %vm952 = vmor %vm950, %vm951
  %v953 = vsel %vm952, %v944, %v949
  %v954 = vrsqrt.pop %v923
  %v955 = vmul.f32 %v954, %v923
  %v956 = vmul.f32 %v955, %v954
  %v957 = vmul.f32 0.5, %v956
  %v958 = vsub.f32 1.5, %v957
  %v959 = vmul.f32 %v954, %v958
  %vm960 = vweird.f32 %v923
  %vm961 = vweird.f32 %v954
  %vm962 = vmor %vm960, %vm961
  %v963 = vsel %vm962, %v954, %v959
  %v964 = vmul.f32 %v896, %v933
  %v965 = vmul.f32 %v897, %v943
  %v966 = vmul.f32 %v898, %v953
  %v967 = vmul.f32 %v899, %v963
  %v968 = vperm.slane %v878, 0
  %v969 = vmul.f32 %v964, %v968
  %v970 = vmul.f32 %v965, %v968
  %v971 = vmul.f32 %v966, %v968
  %v972 = vmul.f32 %v967, %v968
  %v973 = vperm.slane %v879, 0
  %v974 = vadd.f32 %v969, %v973
  %v975 = vadd.f32 %v970, %v973
  %v976 = vadd.f32 %v971, %v973
  %v977 = vadd.f32 %v972, %v973
  %v978 = vsel %vm91, %v974, 0.0
  %v979 = vsel %vm91, %v975, 0.0
  %v980 = vadd.f32 %v978, %v979
  %v981 = vrot.slane %v980, 4
  %v982 = vadd.f32 %v980, %v981
  %v983 = vrot.slane %v982, 2
  %v984 = vadd.f32 %v982, %v983
  %v985 = vrot.slane %v984, 1
  %v986 = vadd.f32 %v984, %v985
  %v987 = vsel %vm91, %v976, 0.0
  %v988 = vsel %vm91, %v977, 0.0
  %v989 = vadd.f32 %v987, %v988
  %v990 = vrot.slane %v989, 4
  %v991 = vadd.f32 %v989, %v990
  %v992 = vrot.slane %v991, 2
  %v993 = vadd.f32 %v991, %v992
  %v994 = vrot.slane %v993, 1
  %v995 = vadd.f32 %v993, %v994
  %v996 = vrcp.pop 16.0
  %v997 = vmul.f32 16.0, %v996
  %v998 = vsub.f32 1.0, %v997
  %v999 = vmul.f32 %v996, %v998
  %v1000 = vadd.f32 %v996, %v999
  %vm1001 = vweird.f32 %v996
  %v1002 = vsel %vm1001, %v996, %v1000
  %v1003 = vmul.f32 %v986, %v1002
  %v1004 = vmul.f32 %v995, %v1002
  %vm1007 = vcmask 1041409
  %v1008 = vsel %vm1007, %v1004, %v1003
  %vm1010 = vcmask 1041408
  %v1011 = vsel %vm1010, %v1008, 0.0
  %v1012 = vpack.c.bf16 %v1011, %v1011
  %v1013 = vld [vmem:[%s1 + $0x70] sm:$0xf]
  %v1014 = vld [vmem:[%s1 + $0x74] sm:$0xf]
  %v1015 = vld [vmem:[%s1 + $0x78] sm:$0xf]
  %v1016 = vld [vmem:[%s1 + $0x7c] sm:$0xf]
  %v1017 = vld [vmem:[%s2 + $0xb] sm:$0x1]
  %v1018 = vperm.slane %v1017, 0
  %v1023 = vunpack.c.l.b16 %v1013
  %v1024 = vunpack.c.l.b16 %v1014
  %v1025 = vunpack.c.l.b16 %v1015
  %v1026 = vunpack.c.l.b16 %v1016
  %v1027 = vpack.c.b16 %v1024, %v1023
  %v1028 = vpack.c.b16 %v1026, %v1025
  %v1032 = vsel %vm91, %v1012, 0
  %1034 = vmatpush.bf16.msra.mxu0 0
  %1035 = vmatpush.bf16.msra.mxu0 0
  %1036 = vmatpush.bf16.msra.mxu0 0
  %1037 = vmatpush.bf16.msra.mxu0 0
  %1038 = vmatpush.bf16.msra.mxu0 0
  %1039 = vmatpush.bf16.msra.mxu0 0
  %1040 = vmatpush.bf16.msra.mxu0 %v1028
  %1041 = vmatpush.bf16.msra.mxu0 %v1027
  %1042 = vmatmul.bf16.gmra.mxu0 %v1032
  %v1043 = vpop.f32.mrf.mxu0
  %v1044 = vadd.f32 %v1018, %v1043
  %v1045 = vpop.f32.mrf.mxu0
  %1046 = vdwg.mxu0
  %1047 = vst [vmem:[%s3] sm:$0xff] %v1044
  // Predicated region
  $region14: #{mfvit_forward.1} parent=0 // pred_check
    _
  $region15: #{mfvit_forward.1} parent=0 // pred_check_branch
    %1049 = sbr.rel (0) target = $region17
  $region16: #{mfvit_forward.1} parent=0 // pred_region
    _
  $region17: #{mfvit_forward.1} parent=0 // pred_fallthru
    _
  // Predicated region
  $region18: #{mfvit_forward.1} parent=0 // pred_check
    _
  $region19: #{mfvit_forward.1} parent=0 // pred_check_branch
    %1051 = sbr.rel (0) target = $region21
  $region20: #{mfvit_forward.1} parent=0 // pred_region
    _
  $region21: #{mfvit_forward.1} parent=0 // pred_fallthru
    _

</llo_original>
